<compile_context>
chip_gen: v5e
topology: v5e:2x2
jax: 0.10.0
libtpu: 0.0.40
codegen_flags: <defaults>
</compile_context>

<pallas_src>
import math
import functools

import jax
import jax.numpy as jnp
from jax import lax
from jax.experimental import pallas as pl
from jax.experimental.pallas import tpu as pltpu

_SQRT2 = math.sqrt(2.0)
_NEG_SLOPE_SQRT2 = 0.2 * _SQRT2


def _round_up(x, m):
    return (x + m - 1) // m * m


def _vmem_limit_bytes():
    cap = 64 * 1024 * 1024  # conservative default (v7x per-core VMEM)
    try:
        info = pltpu.get_tpu_info()
        cap = int(getattr(info, "vmem_capacity_bytes", cap))
    except Exception:
        pass
    # ~75% of physical, capped: ~48 MiB on v7x, ~96 MiB on v5e/v6e.
    return min(int(cap * 3 // 4), 100 * 1024 * 1024)


def _choose_tm(batch, align):
    """Batch-tile size: minimize padding; prefer >=2 tiles (v7x megacore) when big."""
    if batch < 256:
        return _round_up(batch, align)
    best_key, best_tm = None, 128
    for tm in (128, 256, 512, 1024):
        mp = _round_up(batch, tm)
        key = (mp - batch, 0 if (mp // tm) >= 2 else 1, -tm)
        if best_key is None or key < best_key:
            best_key, best_tm = key, tm
    return best_tm


def _epilogue(acc_f32, bias_f32, scale, lr_mul, fused_lrelu, out_dtype):
    out = acc_f32 * scale + bias_f32 * lr_mul
    if fused_lrelu:
        out = jnp.where(out >= 0, _SQRT2 * out, _NEG_SLOPE_SQRT2 * out)
    return out.astype(out_dtype)


def _resident_kernel(x_ref, w_ref, b_ref, o_ref, *, scale, lr_mul, fused_lrelu):
    # Single K step: no accumulator scratch, epilogue fused into the store.
    acc = lax.dot_general(
        x_ref[...], w_ref[...],
        dimension_numbers=(((1,), (1,)), ((), ())),   # contract x[-1] with W[-1]
        preferred_element_type=jnp.float32)
    o_ref[...] = _epilogue(acc, b_ref[...], scale, lr_mul, fused_lrelu, o_ref.dtype)


def _tiled_kernel(x_ref, w_ref, b_ref, o_ref, acc_ref, *, scale, lr_mul, fused_lrelu):
    k = pl.program_id(2)
    part = lax.dot_general(
        x_ref[...], w_ref[...],
        dimension_numbers=(((1,), (1,)), ((), ())),
        preferred_element_type=jnp.float32)

    @pl.when(k == 0)
    def _():
        acc_ref[...] = part          # direct assign: no zero-fill pass

    @pl.when(k != 0)
    def _():
        acc_ref[...] += part

    @pl.when(k == pl.num_programs(2) - 1)
    def _():
        o_ref[...] = _epilogue(acc_ref[...], b_ref[...], scale, lr_mul,
                               fused_lrelu, o_ref.dtype)


def equal_linear(x, weight, bias=None, *, lr_mul=1.0, activation=None,
                 mxu_dtype=jnp.bfloat16, out_dtype=None,
                 block_m=None, block_n=None, block_k=None, force_tiled=False):
    """x: (B, in_dim); weight: (out_dim, in_dim) (PyTorch layout); bias: (out_dim,)."""
    batch, in_dim = x.shape
    out_dim, in_dim_w = weight.shape
    assert in_dim_w == in_dim
    fused_lrelu = activation is not None
    scale = 1.0 / math.sqrt(in_dim) * lr_mul

    out_dtype = jnp.dtype(x.dtype if out_dtype is None else out_dtype)
    op_dtype = jnp.dtype(x.dtype if mxu_dtype is None else mxu_dtype)
    isz = op_dtype.itemsize
    out_isz = out_dtype.itemsize
    m_align = {4: 8, 2: 16, 1: 32}.get(isz, 8)

    if bias is None:
        bias = jnp.zeros((out_dim,), jnp.float32)

    # Cast operands once in the wrapper (halves DMA, no in-kernel VPU cast).
    # NOTE: for repeated inference calls, pre-cast / pre-pad `weight` outside the
    # call to avoid the per-call cast copy.
    if x.dtype != op_dtype:
        x = x.astype(op_dtype)
    w = weight if weight.dtype == op_dtype else weight.astype(op_dtype)
    b2d = bias.reshape(1, out_dim).astype(jnp.float32)

    # Lane-dense output: pad out_dim (W rows + bias) to a multiple of 128.
    Np = _round_up(out_dim, 128)
    if Np != out_dim:
        w = jnp.pad(w, ((0, Np - out_dim), (0, 0)))
        b2d = jnp.pad(b2d, ((0, 0), (0, Np - out_dim)))

    vmem_limit = _vmem_limit_bytes()

    # ----------------- resident-W path (typical EqualLinear shapes) -----------------
    w_bytes = 2 * Np * in_dim * isz          # double-buffered alloc (fetched once)
    use_resident = (not force_tiled) and (block_k is None or block_k >= in_dim) \
        and (w_bytes <= vmem_limit // 3)

    if use_resident:
        tm = block_m or _choose_tm(batch, m_align)

        def footprint(tm_):
            return (2 * tm_ * in_dim * isz        # x double buffer
                    + w_bytes                     # resident W
                    + 2 * tm_ * Np * out_isz      # out double buffer
                    + 2 * Np * 4)                 # bias
        while tm > 2 * m_align and footprint(tm) > int(0.7 * vmem_limit):
            tm = max(_round_up(tm // 2, m_align), m_align)
        use_resident = footprint(tm) <= int(0.7 * vmem_limit)

    if use_resident:
        Mp = _round_up(batch, tm)
        if Mp != batch:
            x = jnp.pad(x, ((0, Mp - batch), (0, 0)))

        cost = pl.CostEstimate(
            flops=2 * Mp * in_dim * Np,
            transcendentals=0,
            bytes_accessed=(Mp * in_dim + Np * in_dim) * isz
                           + Mp * Np * out_isz + Np * 4)

        kernel = functools.partial(_resident_kernel, scale=scale, lr_mul=lr_mul,
                                   fused_lrelu=fused_lrelu)
        out = pl.pallas_call(
            kernel,
            out_shape=jax.ShapeDtypeStruct((Mp, Np), out_dtype),
            grid_spec=pltpu.PrefetchScalarGridSpec(
                num_scalar_prefetch=0,
                grid=(Mp // tm,),
                in_specs=[
                    pl.BlockSpec((tm, in_dim), lambda i: (i, 0)),   # x tile
                    pl.BlockSpec((Np, in_dim), lambda i: (0, 0)),   # W: fetched once, resident
                    pl.BlockSpec((1, Np), lambda i: (0, 0)),        # bias: resident
                ],
                out_specs=pl.BlockSpec((tm, Np), lambda i: (i, 0)),
            ),
            compiler_params=pltpu.CompilerParams(
                dimension_semantics=("parallel",),
                vmem_limit_bytes=vmem_limit,
            ),
            cost_estimate=cost,
        )(x, w, b2d)
        return out[:batch, :out_dim]

    # ----------------- tiled fallback (very large W and/or K) -----------------
    tm = block_m or min(_choose_tm(batch, m_align), 512)

    if block_n is not None:
        tn = block_n
    else:
        tn = 128
        for cand in range(min(Np, 512), 127, -128):   # any 128-multiple dividing Np
            if Np % cand == 0:
                tn = cand
                break

    if block_k is not None:
        tk = min(block_k, in_dim)
        Kp = _round_up(in_dim, tk)
    elif in_dim <= 2048:
        tk, Kp = in_dim, in_dim
    else:
        tk = 512
        Kp = _round_up(in_dim, tk)

    Mp = _round_up(batch, tm)
    if (Mp, Kp) != (batch, in_dim):
        x = jnp.pad(x, ((0, Mp - batch), (0, Kp - in_dim)))
    if Kp != in_dim:
        w = jnp.pad(w, ((0, 0), (0, Kp - in_dim)))

    grid = (Mp // tm, Np // tn, Kp // tk)

    cost = pl.CostEstimate(
        flops=2 * Mp * Kp * Np,
        transcendentals=0,
        bytes_accessed=(Mp * Kp + (Mp // tm) * Np * Kp) * isz
                       + Mp * Np * out_isz + Np * 4)

    kernel = functools.partial(_tiled_kernel, scale=scale, lr_mul=lr_mul,
                               fused_lrelu=fused_lrelu)
    out = pl.pallas_call(
        kernel,
        out_shape=jax.ShapeDtypeStruct((Mp, Np), out_dtype),
        grid_spec=pltpu.PrefetchScalarGridSpec(
            num_scalar_prefetch=0,
            grid=grid,
            in_specs=[
                pl.BlockSpec((tm, tk), lambda i, j, k: (i, k)),   # x tile
                pl.BlockSpec((tn, tk), lambda i, j, k: (j, k)),   # W tile (PyTorch layout)
                pl.BlockSpec((1, tn), lambda i, j, k: (0, j)),    # bias tile
            ],
            out_specs=pl.BlockSpec((tm, tn), lambda i, j, k: (i, j)),
            scratch_shapes=[pltpu.VMEM((tm, tn), jnp.float32)],
        ),
        compiler_params=pltpu.CompilerParams(
            dimension_semantics=("parallel", "parallel", "arbitrary"),
            vmem_limit_bytes=vmem_limit,
        ),
        cost_estimate=cost,
    )(x, w, b2d)
    return out[:batch, :out_dim]


def equal_linear_ref(x, weight, bias, *, lr_mul=1.0, activation=None):
    scale = 1.0 / math.sqrt(x.shape[-1]) * lr_mul
    out = x @ (weight * scale).T + bias * lr_mul
    if activation is not None:
        out = jnp.where(out >= 0, out, 0.2 * out) * math.sqrt(2.0)
    return out


if __name__ == "__main__":
    key = jax.random.PRNGKey(0)
    k_x, k_w, k_x2, k_w2, k_b2, k_x4, k_w4, k_b4 = jax.random.split(key, 8)

    # --- shape 1: small, exact f32 path, with and without fused_lrelu ---
    batch, in_dim, out_dim = 8, 32, 16
    x = jax.random.normal(k_x, (batch, in_dim), dtype=jnp.float32)
    weight = jax.random.normal(k_w, (out_dim, in_dim), dtype=jnp.float32)
    bias = jnp.zeros((out_dim,), dtype=jnp.float32)

    out = jax.block_until_ready(
        equal_linear(x, weight, bias, lr_mul=1.0, activation=None, mxu_dtype=None))
    ref = equal_linear_ref(x, weight, bias, lr_mul=1.0, activation=None)
    assert jnp.allclose(out, ref, atol=1e-5, rtol=1e-5)

    out_act = jax.block_until_ready(
        equal_linear(x, weight, bias, lr_mul=1.0, activation="fused_lrelu",
                     mxu_dtype=None))
    ref_act = equal_linear_ref(x, weight, bias, lr_mul=1.0, activation="fused_lrelu")
    assert jnp.allclose(out_act, ref_act, atol=1e-5, rtol=1e-5)

    # --- shape 2: non-trivial lr_mul + shapes needing M/N padding (exact f32) ---
    batch2, in_dim2, out_dim2 = 10, 48, 24
    lr_mul2 = 0.01
    x2 = jax.random.normal(k_x2, (batch2, in_dim2), dtype=jnp.float32)
    weight2 = jax.random.normal(k_w2, (out_dim2, in_dim2), dtype=jnp.float32) / lr_mul2
    bias2 = jax.random.normal(k_b2, (out_dim2,), dtype=jnp.float32)
    out2 = jax.block_until_ready(
        equal_linear(x2, weight2, bias2, lr_mul=lr_mul2, activation="fused_lrelu",
                     mxu_dtype=None))
    ref2 = equal_linear_ref(x2, weight2, bias2, lr_mul=lr_mul2,
                            activation="fused_lrelu")
    assert jnp.allclose(out2, ref2, atol=1e-5, rtol=1e-5)

    # --- shape 3: default bf16 MXU path (looser tolerance vs f32 reference) ---
    out3 = jax.block_until_ready(
        equal_linear(x, weight, bias, activation="fused_lrelu"))
    ref3 = equal_linear_ref(x, weight, bias, activation="fused_lrelu")
    assert jnp.allclose(out3, ref3, atol=5e-2, rtol=5e-2)

    # --- shape 4: exercise the tiled multi-K fallback path (exact f32) ---
    batch4, in_dim4, out_dim4 = 16, 256, 384
    x4 = jax.random.normal(k_x4, (batch4, in_dim4), dtype=jnp.float32)
    weight4 = jax.random.normal(k_w4, (out_dim4, in_dim4), dtype=jnp.float32)
    bias4 = jax.random.normal(k_b4, (out_dim4,), dtype=jnp.float32)
    out4 = jax.block_until_ready(
        equal_linear(x4, weight4, bias4, activation="fused_lrelu", mxu_dtype=None,
                     force_tiled=True, block_k=128))
    ref4 = equal_linear_ref(x4, weight4, bias4, activation="fused_lrelu")
    assert jnp.allclose(out4, ref4, atol=1e-4, rtol=1e-4)

    print("KERNEL_OK")
</pallas_src>

<mosaic_0001>
module attributes {stable_mosaic.version = 11 : i64} {
  func.func @_resident_kernel(%arg0: i32, %arg1: memref<8x32xf32, #tpu.memory_space<vmem>>, %arg2: memref<128x32xf32, #tpu.memory_space<vmem>>, %arg3: memref<1x128xf32, #tpu.memory_space<vmem>>, %arg4: memref<8x128xf32, #tpu.memory_space<vmem>>) attributes {dimension_semantics = [#tpu.dimension_semantics<parallel>], iteration_bounds = array<i64: 1>, scalar_prefetch = 0 : i64, scratch_operands = 0 : i64, tpu.core_type = #tpu.core_type<tc>, window_params = [{transform_indices = @transform_0, window_bounds = array<i64: 8, 32>}, {pipeline_mode = #tpu.pipeline_mode<synchronous>, transform_indices = @transform_1, window_bounds = array<i64: 128, 32>}, {pipeline_mode = #tpu.pipeline_mode<synchronous>, transform_indices = @transform_2, window_bounds = array<i64: 1, 128>}, {transform_indices = @transform_3, window_bounds = array<i64: 8, 128>}]} {
    %c0 = arith.constant 0 : index
    %c0_0 = arith.constant 0 : index
    %0 = vector.load %arg1[%c0, %c0_0] : memref<8x32xf32, #tpu.memory_space<vmem>>, vector<8x32xf32>
    %c0_1 = arith.constant 0 : index
    %c0_2 = arith.constant 0 : index
    %1 = vector.load %arg2[%c0_1, %c0_2] : memref<128x32xf32, #tpu.memory_space<vmem>>, vector<128x32xf32>
    %cst = arith.constant dense<0.000000e+00> : vector<8x128xf32>
    %2 = tpu.matmul %0, %1, %cst {dimension_numbers = #tpu.dot_dimension_numbers<[1], [1], [0], [0], [0, 0, 1, 0], [], []>} : vector<8x32xf32>, vector<128x32xf32>, vector<8x128xf32> -> vector<8x128xf32>
    %c0_3 = arith.constant 0 : index
    %c0_4 = arith.constant 0 : index
    %3 = vector.load %arg3[%c0_3, %c0_4] : memref<1x128xf32, #tpu.memory_space<vmem>>, vector<1x128xf32>
    %cst_5 = arith.constant 0.176776692 : f32
    %4 = vector.broadcast %cst_5 : f32 to vector<8x128xf32>
    %5 = arith.mulf %2, %4 : vector<8x128xf32>
    %cst_6 = arith.constant 1.000000e+00 : f32
    %6 = vector.broadcast %cst_6 : f32 to vector<1x128xf32>
    %7 = arith.mulf %3, %6 : vector<1x128xf32>
    %8 = vector.broadcast %7 : vector<1x128xf32> to vector<8x128xf32>
    %9 = arith.addf %5, %8 : vector<8x128xf32>
    %c0_7 = arith.constant 0 : index
    %c0_8 = arith.constant 0 : index
    %10 = vector.load %arg4[%c0_7, %c0_8] : memref<8x128xf32, #tpu.memory_space<vmem>>, vector<8x128xf32>
    tpu.vector_store %arg4[%c0_7, %c0_8], %9 {strides = array<i32>} : memref<8x128xf32, #tpu.memory_space<vmem>>, vector<8x128xf32>,
    return
  }
  func.func @transform_0(%arg0: i32) -> (i32, i32) {
    %c0_i32 = arith.constant 0 : i32
    %c0_i32_0 = arith.constant 0 : i32
    return %arg0, %c0_i32 : i32, i32
  }
  func.func @transform_1(%arg0: i32) -> (i32, i32) {
    %c0_i32 = arith.constant 0 : i32
    %c0_i32_0 = arith.constant 0 : i32
    %c0_i32_1 = arith.constant 0 : i32
    return %c0_i32, %c0_i32_0 : i32, i32
  }
  func.func @transform_2(%arg0: i32) -> (i32, i32) {
    %c0_i32 = arith.constant 0 : i32
    %c0_i32_0 = arith.constant 0 : i32
    %c0_i32_1 = arith.constant 0 : i32
    return %c0_i32, %c0_i32_0 : i32, i32
  }
  func.func @transform_3(%arg0: i32) -> (i32, i32) {
    %c0_i32 = arith.constant 0 : i32
    %c0_i32_0 = arith.constant 0 : i32
    return %arg0, %c0_i32 : i32, i32
  }
}

</mosaic_0001>

<llo_original>
// kernel: tpu_custom_call.1
$region0: #{tpu_custom_call.1}
  #allocation0 [shape = 'u32[]', space=smem, size = 0x4, offset = 0x4, fixed_abs, tag = 'smem constant byte address 0x4 - core index']
  #allocation1 [shape = 'u32[72,128]{1,0:T(1,128)}', space=vmem, size = 0x9000, scoped, tag = 'internal scratch']
  %s0 = inlined_call_operand.vmem [shape: f32[8,32], index: 0, kind: input, shape index: {}]
  %s1 = inlined_call_operand.vmem [shape: f32[128,32], index: 1, kind: input, shape index: {}]
  %s2 = inlined_call_operand.vmem [shape: f32[1,128], index: 2, kind: input, shape index: {}]
  %s3 = inlined_call_operand.hbm [shape: f32[8,128], index: 3, kind: output, shape index: {}]
  %s4 = sld [smem:[#allocation0]]
  $region22: #{tpu_custom_call.1} parent=0
    _
  %s6 = ssub.s32 1, %s4
  %s7 = scalar_select 0, %s6, %s4
  $region1: #{tpu_custom_call.1} parent=0
    #allocation2 [shape = 'u8[4096]{0}', space=vmem, size = 0x1000, scoped, tag = 'output window, operand 0, single buffered']
    #allocation3 [shape = 's32[1]{0}', space=sflag, size = 0x4, scoped, tag = 'scoped memory for tpu_custom_call.1']
    %8 = vsyncpa [#allocation3], 0
    // Predicated region
    $region2: #{tpu_custom_call.1} parent=1 // pred_check
      _
    $region3: #{tpu_custom_call.1} parent=1 // pred_check_branch
      %10 = sbr.rel (0) target = $region5
    $region4: #{tpu_custom_call.1} parent=1 // pred_region
      _
    $region5: #{tpu_custom_call.1} parent=1 // pred_fallthru
      _
    // Predicated region
    $region6: #{tpu_custom_call.1} parent=1 // pred_check
      _
    $region7: #{tpu_custom_call.1} parent=1 // pred_check_branch
      %12 = sbr.rel (0) target = $region9
    $region8: #{tpu_custom_call.1} parent=1 // pred_region
      _
    $region9: #{tpu_custom_call.1} parent=1 // pred_fallthru
      _
    // Predicated region
    $region10: #{tpu_custom_call.1} parent=1 // pred_check
      _
    $region11: #{tpu_custom_call.1} parent=1 // pred_check_branch
      %14 = sbr.rel (0) target = $region13
    $region12: #{tpu_custom_call.1} parent=1 // pred_region
      _
    $region13: #{tpu_custom_call.1} parent=1 // pred_fallthru
      _
    %v15 = vld [vmem:[%s0] sm:$0xff]
    %v16 = vld [vmem:[%s1] sm:$0xff]
    %v17 = vld [vmem:[%s1 + $0x8] sm:$0xff]
    %v18 = vld [vmem:[%s1 + $0x10] sm:$0xff]
    %v19 = vld [vmem:[%s1 + $0x18] sm:$0xff]
    %v20 = vld [vmem:[%s1 + $0x20] sm:$0xff]
    %v21 = vld [vmem:[%s1 + $0x28] sm:$0xff]
    %v22 = vld [vmem:[%s1 + $0x30] sm:$0xff]
    %v23 = vld [vmem:[%s1 + $0x38] sm:$0xff]
    %v24 = vld [vmem:[%s1 + $0x40] sm:$0xff]
    %v25 = vld [vmem:[%s1 + $0x48] sm:$0xff]
    %v26 = vld [vmem:[%s1 + $0x50] sm:$0xff]
    %v27 = vld [vmem:[%s1 + $0x58] sm:$0xff]
    %v28 = vld [vmem:[%s1 + $0x60] sm:$0xff]
    %v29 = vld [vmem:[%s1 + $0x68] sm:$0xff]
    %v30 = vld [vmem:[%s1 + $0x70] sm:$0xff]
    %v31 = vld [vmem:[%s1 + $0x78] sm:$0xff]
    %vm32 = vcmask 261120
    %v34 = vsel %vm32, %v15, 0
    %v37 = vsel %vm32, %v16, 0
    %v40 = vsel %vm32, %v17, 0
    %v43 = vsel %vm32, %v18, 0
    %v46 = vsel %vm32, %v19, 0
    %v49 = vsel %vm32, %v20, 0
    %v52 = vsel %vm32, %v21, 0
    %v55 = vsel %vm32, %v22, 0
    %v58 = vsel %vm32, %v23, 0
    %v61 = vsel %vm32, %v24, 0
    %v64 = vsel %vm32, %v25, 0
    %v67 = vsel %vm32, %v26, 0
    %v70 = vsel %vm32, %v27, 0
    %v73 = vsel %vm32, %v28, 0
    %v76 = vsel %vm32, %v29, 0
    %v79 = vsel %vm32, %v30, 0
    %v82 = vsel %vm32, %v31, 0
    %84 = vmatpush.xpose.msra.mxu0 %v82
    %85 = vmatpush.xpose.msra.mxu0 %v79
    %86 = vmatpush.xpose.msra.mxu0 %v76
    %87 = vmatpush.xpose.msra.mxu0 %v73
    %88 = vmatpush.xpose.msra.mxu0 %v70
    %89 = vmatpush.xpose.msra.mxu0 %v67
    %90 = vmatpush.xpose.msra.mxu0 %v64
    %91 = vmatpush.xpose.msra.mxu0 %v61
    %92 = vmatpush.xpose.msra.mxu0 %v58
    %93 = vmatpush.xpose.msra.mxu0 %v55
    %94 = vmatpush.xpose.msra.mxu0 %v52
    %95 = vmatpush.xpose.msra.mxu0 %v49
    %96 = vmatpush.xpose.msra.mxu0 %v46
    %97 = vmatpush.xpose.msra.mxu0 %v43
    %98 = vmatpush.xpose.msra.mxu0 %v40
    %99 = vmatpush.xpose.msra.mxu0 %v37
    %100 = vmatmul.f32.gmra.mxu0 %v34
    %v101 = vpop.f32.mrf.mxu0
    %v102 = vadd.f32 0.0, %v101
    %103 = vdwg.mxu0
    %v104 = vld [vmem:[%s2] sm:$0x1]
    %v105 = vmul.f32 %v102, 0.17677669
    %v107 = vperm.slane %v104, 0
    %v109 = vadd.f32 %v105, %v107
    %110 = vst [vmem:[#allocation2] sm:$0xff] %v109
    // Predicated region
    $region14: #{tpu_custom_call.1} parent=1 // pred_check
      _
    $region15: #{tpu_custom_call.1} parent=1 // pred_check_branch
      %112 = sbr.rel (0) target = $region17
    $region16: #{tpu_custom_call.1} parent=1 // pred_region
      %114 = vsyncadd [#allocation3], 0
      %s116 = sshll.u32 [#allocation2], 4
      %s117 = int_to_ptr.vmem [resolvable:$true] %s116
      %s118 = sshll.u32 %s3, 4
      %s119 = int_to_ptr.hbm [resolvable:$true] %s118
      %121 = dma.vmem_to_hbm [thread:$0]  %s117, 128, %s119, [#allocation3]
    $region17: #{tpu_custom_call.1} parent=1 // pred_fallthru
      _
    // Predicated region
    $region18: #{tpu_custom_call.1} parent=1 // pred_check
      _
    $region19: #{tpu_custom_call.1} parent=1 // pred_check_branch
      %123 = sbr.rel (0) target = $region21
    $region20: #{tpu_custom_call.1} parent=1 // pred_region
      %125 = dma.done [#allocation3], 128
    $region21: #{tpu_custom_call.1} parent=1 // pred_fallthru
      _
    %126 = vsyncpa [#allocation3], 1

</llo_original>
